<compile_context>
chip_gen: v7x
topology: tpu7x:2x2x1
jax: 0.10.0
libtpu: 0.0.40
codegen_flags: <defaults>
</compile_context>

<pallas_src>
import functools

import jax
import jax.numpy as jnp
from jax import lax
from jax.experimental import pallas as pl
from jax.experimental.pallas import tpu as pltpu

SMOOTH = 1.0
DICE_EPS = 1e-8
LOG_CLAMP = -100.0  # PyTorch F.binary_cross_entropy clamps log terms at -100
LANE = 128
ROW_BLOCK = 8
DEFAULT_TILE_HW = 2048  # lanes per grid step (multiple of 128)


def _round_up(a, b):
    return ((a + b - 1) // b) * b


def _dc_bce_kernel(x_ref, y_ref, out_ref, tp_acc, sxy_acc, ll_acc, *,
                   binary_target):
    """Grid = (row_blocks [parallel], spatial_tiles [arbitrary])."""
    ks = pl.program_id(1)

    @pl.when(ks == 0)
    def _init():
        tp_acc[...] = jnp.zeros_like(tp_acc)
        sxy_acc[...] = jnp.zeros_like(sxy_acc)
        ll_acc[...] = jnp.zeros_like(ll_acc)

    x = x_ref[...].astype(jnp.float32)
    y = y_ref[...].astype(jnp.float32)

    # Log-likelihood (negated in the wrapper -> BCE). Zero-padded elements
    # (x=0, y=0) contribute exactly 0 on both paths.
    if binary_target:
        # Valid only for targets in {0, 1}: one EUP log per element.
        p = jnp.where(y > 0.5, x, 1.0 - x)
        ll = jnp.maximum(jnp.log(p), LOG_CLAMP)
    else:
        log_x = jnp.maximum(jnp.log(x), LOG_CLAMP)
        log_1mx = jnp.maximum(jnp.log(1.0 - x), LOG_CLAMP)
        ll = y * log_x + (1.0 - y) * log_1mx

    # Full-width VALU accumulation; cross-lane reduction deferred to finalize.
    tp_acc[...] += x * y
    sxy_acc[...] += x + y          # fp + fn + 2*tp == sum(x) + sum(y)
    ll_acc[...] += ll

    @pl.when(ks == pl.num_programs(1) - 1)
    def _finalize():
        # Per-row partial sums; packed into a lane-dense (ROW_BLOCK, 128) tile:
        #   lane 0 -> tp, lane 1 -> sum(x)+sum(y), lane 2 -> log-likelihood sum.
        tp = jnp.sum(tp_acc[...], axis=1, keepdims=True)      # (ROW_BLOCK, 1)
        sxy = jnp.sum(sxy_acc[...], axis=1, keepdims=True)    # (ROW_BLOCK, 1)
        llr = jnp.sum(ll_acc[...], axis=1, keepdims=True)     # (ROW_BLOCK, 1)
        lane = lax.broadcasted_iota(jnp.int32, (ROW_BLOCK, LANE), 1)
        out_ref[...] = (jnp.where(lane == 0, tp, 0.0)
                        + jnp.where(lane == 1, sxy, 0.0)
                        + jnp.where(lane == 2, llr, 0.0))


def dc_and_bce_loss(net_output, target, mask=None, *, binary_target=False,
                    tile_hw=DEFAULT_TILE_HW):
    """net_output, target: (B, C, H, W). Returns scalar float32 loss."""
    # TODO(synk): loss_mask / BCE weight path not implemented (mask=None only).
    assert mask is None
    B, C, H, W = net_output.shape
    R = B * C
    HW = H * W
    n_elems = R * HW

    # Keep native dtypes (bf16 / int8 targets halve/quarter HBM traffic);
    # upcast to f32 happens inside the kernel.
    x2d = jnp.asarray(net_output).reshape(R, HW)
    y2d = jnp.asarray(target).reshape(R, HW)

    # Tile / padding geometry.
    hw128 = _round_up(HW, LANE)
    tile = _round_up(min(int(tile_hw), hw128), LANE)
    hw_pad = _round_up(hw128, tile)
    r_pad = _round_up(R, ROW_BLOCK)
    if (r_pad, hw_pad) != (R, HW):
        x2d = jnp.pad(x2d, ((0, r_pad - R), (0, hw_pad - HW)))
        y2d = jnp.pad(y2d, ((0, r_pad - R), (0, hw_pad - HW)))

    num_rb = r_pad // ROW_BLOCK
    num_ks = hw_pad // tile

    kernel = functools.partial(_dc_bce_kernel, binary_target=binary_target)

    out_bytes = r_pad * LANE * 4
    cost = pl.CostEstimate(
        flops=10 * n_elems,
        transcendentals=(1 if binary_target else 2) * n_elems,
        bytes_accessed=int(x2d.size * x2d.dtype.itemsize
                           + y2d.size * y2d.dtype.itemsize
                           + out_bytes),
    )

    out = pl.pallas_call(
        kernel,
        out_shape=jax.ShapeDtypeStruct((r_pad, LANE), jnp.float32),
        grid_spec=pltpu.PrefetchScalarGridSpec(
            num_scalar_prefetch=0,
            grid=(num_rb, num_ks),
            in_specs=[
                pl.BlockSpec((ROW_BLOCK, tile), lambda rb, ks: (rb, ks)),
                pl.BlockSpec((ROW_BLOCK, tile), lambda rb, ks: (rb, ks)),
            ],
            out_specs=pl.BlockSpec((ROW_BLOCK, LANE), lambda rb, ks: (rb, 0)),
            scratch_shapes=[
                pltpu.VMEM((ROW_BLOCK, tile), jnp.float32),  # tp accumulator
                pltpu.VMEM((ROW_BLOCK, tile), jnp.float32),  # x+y accumulator
                pltpu.VMEM((ROW_BLOCK, tile), jnp.float32),  # log-likelihood acc
            ],
        ),
        compiler_params=pltpu.CompilerParams(
            dimension_semantics=("parallel", "arbitrary"),
            vmem_limit_bytes=32 * 1024 * 1024,  # safe on v5e/v6e/v7x; footprint is tiny
        ),
        cost_estimate=cost,
    )(x2d, y2d)

    # Tiny wrapper-side combine of the per-row partials.
    tp = out[:R, 0]
    sxy = out[:R, 1]
    ll_total = jnp.sum(out[:R, 2])
    dc = (2.0 * tp + SMOOTH) / (sxy + SMOOTH + DICE_EPS)
    ce_loss = -ll_total / n_elems
    dc_loss = -jnp.mean(dc)
    return (ce_loss + dc_loss).astype(jnp.float32)


def _reference(net_output, target):
    # Pure-JAX reference mirroring the PyTorch module (mask=None).
    x = jnp.asarray(net_output, jnp.float32)
    y = jnp.asarray(target, jnp.float32)
    log_x = jnp.maximum(jnp.log(x), LOG_CLAMP)
    log_1mx = jnp.maximum(jnp.log(1.0 - x), LOG_CLAMP)
    ce = jnp.mean(-(y * log_x + (1.0 - y) * log_1mx))
    axes = (2, 3)
    tp = jnp.sum(x * y, axis=axes)
    fp = jnp.sum(x * (1.0 - y), axis=axes)
    fn = jnp.sum((1.0 - x) * y, axis=axes)
    dc = (2.0 * tp + SMOOTH) / (2.0 * tp + fp + fn + SMOOTH + DICE_EPS)
    return ce + (-jnp.mean(dc))


if __name__ == "__main__":
    key = jax.random.PRNGKey(0)
    k1, k2 = jax.random.split(key)
    # Small shape that exercises row padding (B*C=6 -> 8) and spatial padding.
    B, C, H, W = 2, 3, 30, 30
    net_output = jax.nn.sigmoid(jax.random.normal(k1, (B, C, H, W), jnp.float32))
    target = (jax.random.uniform(k2, (B, C, H, W)) > 0.5).astype(jnp.float32)

    # Fast single-log path (targets are exactly binary here); single spatial tile.
    res_fast = dc_and_bce_loss(net_output, target, binary_target=True)
    # General two-log path with a small tile to exercise multi-step accumulation.
    res_gen = dc_and_bce_loss(net_output, target, binary_target=False,
                              tile_hw=256)
    res_fast, res_gen = jax.block_until_ready((res_fast, res_gen))

    ref = _reference(net_output, target)
    assert jnp.allclose(res_fast, ref, rtol=1e-5, atol=1e-5), (res_fast, ref)
    assert jnp.allclose(res_gen, ref, rtol=1e-5, atol=1e-5), (res_gen, ref)
    print("KERNEL_OK")
</pallas_src>

<mosaic_0001>
module attributes {stable_mosaic.version = 11 : i64} {
  func.func @_dc_bce_kernel(%arg0: i32, %arg1: i32, %arg2: memref<8x1024xf32, #tpu.memory_space<vmem>>, %arg3: memref<8x1024xf32, #tpu.memory_space<vmem>>, %arg4: memref<8x128xf32, #tpu.memory_space<vmem>>, %arg5: memref<8x1024xf32, #tpu.memory_space<vmem>>, %arg6: memref<8x1024xf32, #tpu.memory_space<vmem>>, %arg7: memref<8x1024xf32, #tpu.memory_space<vmem>>) attributes {dimension_semantics = [#tpu.dimension_semantics<parallel>, #tpu.dimension_semantics<arbitrary>], iteration_bounds = array<i64: 1, 1>, scalar_prefetch = 0 : i64, scratch_operands = 3 : i64, tpu.core_type = #tpu.core_type<tc>, window_params = [{transform_indices = @transform_0, window_bounds = array<i64: 8, 1024>}, {transform_indices = @transform_1, window_bounds = array<i64: 8, 1024>}, {transform_indices = @transform_2, window_bounds = array<i64: 8, 128>}]} {
    %c0_i32 = arith.constant 0 : i32
    %0 = arith.cmpi eq, %arg1, %c0_i32 : i32
    %1 = arith.extui %0 : i1 to i32
    %c0_i32_0 = arith.constant 0 : i32
    %2 = arith.cmpi ne, %1, %c0_i32_0 : i32
    scf.if %2 {
      %cst_20 = arith.constant 0.000000e+00 : f32
      %27 = vector.broadcast %cst_20 : f32 to vector<8x1024xf32>
      %c0_21 = arith.constant 0 : index
      %c0_22 = arith.constant 0 : index
      %28 = vector.load %arg5[%c0_21, %c0_22] : memref<8x1024xf32, #tpu.memory_space<vmem>>, vector<8x1024xf32>
      tpu.vector_store %arg5[%c0_21, %c0_22], %27 {strides = array<i32>} : memref<8x1024xf32, #tpu.memory_space<vmem>>, vector<8x1024xf32>,
      %cst_23 = arith.constant 0.000000e+00 : f32
      %29 = vector.broadcast %cst_23 : f32 to vector<8x1024xf32>
      %c0_24 = arith.constant 0 : index
      %c0_25 = arith.constant 0 : index
      %30 = vector.load %arg6[%c0_24, %c0_25] : memref<8x1024xf32, #tpu.memory_space<vmem>>, vector<8x1024xf32>
      tpu.vector_store %arg6[%c0_24, %c0_25], %29 {strides = array<i32>} : memref<8x1024xf32, #tpu.memory_space<vmem>>, vector<8x1024xf32>,
      %cst_26 = arith.constant 0.000000e+00 : f32
      %31 = vector.broadcast %cst_26 : f32 to vector<8x1024xf32>
      %c0_27 = arith.constant 0 : index
      %c0_28 = arith.constant 0 : index
      %32 = vector.load %arg7[%c0_27, %c0_28] : memref<8x1024xf32, #tpu.memory_space<vmem>>, vector<8x1024xf32>
      tpu.vector_store %arg7[%c0_27, %c0_28], %31 {strides = array<i32>} : memref<8x1024xf32, #tpu.memory_space<vmem>>, vector<8x1024xf32>,
    } else {
    }
    %c0 = arith.constant 0 : index
    %c0_1 = arith.constant 0 : index
    %3 = vector.load %arg2[%c0, %c0_1] : memref<8x1024xf32, #tpu.memory_space<vmem>>, vector<8x1024xf32>
    %c0_2 = arith.constant 0 : index
    %c0_3 = arith.constant 0 : index
    %4 = vector.load %arg3[%c0_2, %c0_3] : memref<8x1024xf32, #tpu.memory_space<vmem>>, vector<8x1024xf32>
    %cst = arith.constant 5.000000e-01 : f32
    %5 = vector.broadcast %cst : f32 to vector<8x1024xf32>
    %6 = arith.cmpf ogt, %4, %5 : vector<8x1024xf32>
    %cst_4 = arith.constant 1.000000e+00 : f32
    %7 = vector.broadcast %cst_4 : f32 to vector<8x1024xf32>
    %8 = arith.subf %7, %3 : vector<8x1024xf32>
    %9 = arith.select %6, %3, %8 : vector<8x1024xi1>, vector<8x1024xf32>
    %10 = math.log %9 : vector<8x1024xf32>
    %cst_5 = arith.constant -1.000000e+02 : f32
    %11 = vector.broadcast %cst_5 : f32 to vector<8x1024xf32>
    %12 = arith.maximumf %10, %11 : vector<8x1024xf32>
    %c0_6 = arith.constant 0 : index
    %c0_7 = arith.constant 0 : index
    %13 = vector.load %arg5[%c0_6, %c0_7] : memref<8x1024xf32, #tpu.memory_space<vmem>>, vector<8x1024xf32>
    %14 = arith.mulf %3, %4 : vector<8x1024xf32>
    %15 = arith.addf %13, %14 : vector<8x1024xf32>
    %c0_8 = arith.constant 0 : index
    %c0_9 = arith.constant 0 : index
    %16 = vector.load %arg5[%c0_8, %c0_9] : memref<8x1024xf32, #tpu.memory_space<vmem>>, vector<8x1024xf32>
    tpu.vector_store %arg5[%c0_8, %c0_9], %15 {strides = array<i32>} : memref<8x1024xf32, #tpu.memory_space<vmem>>, vector<8x1024xf32>,
    %c0_10 = arith.constant 0 : index
    %c0_11 = arith.constant 0 : index
    %17 = vector.load %arg6[%c0_10, %c0_11] : memref<8x1024xf32, #tpu.memory_space<vmem>>, vector<8x1024xf32>
    %18 = arith.addf %3, %4 : vector<8x1024xf32>
    %19 = arith.addf %17, %18 : vector<8x1024xf32>
    %c0_12 = arith.constant 0 : index
    %c0_13 = arith.constant 0 : index
    %20 = vector.load %arg6[%c0_12, %c0_13] : memref<8x1024xf32, #tpu.memory_space<vmem>>, vector<8x1024xf32>
    tpu.vector_store %arg6[%c0_12, %c0_13], %19 {strides = array<i32>} : memref<8x1024xf32, #tpu.memory_space<vmem>>, vector<8x1024xf32>,
    %c0_14 = arith.constant 0 : index
    %c0_15 = arith.constant 0 : index
    %21 = vector.load %arg7[%c0_14, %c0_15] : memref<8x1024xf32, #tpu.memory_space<vmem>>, vector<8x1024xf32>
    %22 = arith.addf %21, %12 : vector<8x1024xf32>
    %c0_16 = arith.constant 0 : index
    %c0_17 = arith.constant 0 : index
    %23 = vector.load %arg7[%c0_16, %c0_17] : memref<8x1024xf32, #tpu.memory_space<vmem>>, vector<8x1024xf32>
    tpu.vector_store %arg7[%c0_16, %c0_17], %22 {strides = array<i32>} : memref<8x1024xf32, #tpu.memory_space<vmem>>, vector<8x1024xf32>,
    %c0_i32_18 = arith.constant 0 : i32
    %24 = arith.cmpi eq, %arg1, %c0_i32_18 : i32
    %25 = arith.extui %24 : i1 to i32
    %c0_i32_19 = arith.constant 0 : i32
    %26 = arith.cmpi ne, %25, %c0_i32_19 : i32
    scf.if %26 {
      %c0_20 = arith.constant 0 : index
      %c0_21 = arith.constant 0 : index
      %27 = vector.load %arg5[%c0_20, %c0_21] : memref<8x1024xf32, #tpu.memory_space<vmem>>, vector<8x1024xf32>
      %cst_22 = arith.constant dense<0.000000e+00> : vector<8xf32>
      %28 = vector.multi_reduction <add>, %27, %cst_22 [1] : vector<8x1024xf32> to vector<8xf32>
      %29 = vector.shape_cast %28 : vector<8xf32> to vector<8x1xf32>
      %c0_23 = arith.constant 0 : index
      %c0_24 = arith.constant 0 : index
      %30 = vector.load %arg6[%c0_23, %c0_24] : memref<8x1024xf32, #tpu.memory_space<vmem>>, vector<8x1024xf32>
      %cst_25 = arith.constant dense<0.000000e+00> : vector<8xf32>
      %31 = vector.multi_reduction <add>, %30, %cst_25 [1] : vector<8x1024xf32> to vector<8xf32>
      %32 = vector.shape_cast %31 : vector<8xf32> to vector<8x1xf32>
      %c0_26 = arith.constant 0 : index
      %c0_27 = arith.constant 0 : index
      %33 = vector.load %arg7[%c0_26, %c0_27] : memref<8x1024xf32, #tpu.memory_space<vmem>>, vector<8x1024xf32>
      %cst_28 = arith.constant dense<0.000000e+00> : vector<8xf32>
      %34 = vector.multi_reduction <add>, %33, %cst_28 [1] : vector<8x1024xf32> to vector<8xf32>
      %35 = vector.shape_cast %34 : vector<8xf32> to vector<8x1xf32>
      %36 = tpu.iota {dimensions = array<i32: 1>} : vector<8x128xi32>
      %c0_i32_29 = arith.constant 0 : i32
      %37 = vector.broadcast %c0_i32_29 : i32 to vector<8x128xi32>
      %38 = arith.cmpi eq, %36, %37 : vector<8x128xi32>
      %cst_30 = arith.constant 0.000000e+00 : f32
      %39 = vector.shape_cast %29 : vector<8x1xf32> to vector<8x1xf32>
      %40 = vector.broadcast %39 : vector<8x1xf32> to vector<8x128xf32>
      %41 = vector.broadcast %cst_30 : f32 to vector<8x128xf32>
      %42 = arith.select %38, %40, %41 : vector<8x128xi1>, vector<8x128xf32>
      %c1_i32 = arith.constant 1 : i32
      %43 = vector.broadcast %c1_i32 : i32 to vector<8x128xi32>
      %44 = arith.cmpi eq, %36, %43 : vector<8x128xi32>
      %cst_31 = arith.constant 0.000000e+00 : f32
      %45 = vector.shape_cast %32 : vector<8x1xf32> to vector<8x1xf32>
      %46 = vector.broadcast %45 : vector<8x1xf32> to vector<8x128xf32>
      %47 = vector.broadcast %cst_31 : f32 to vector<8x128xf32>
      %48 = arith.select %44, %46, %47 : vector<8x128xi1>, vector<8x128xf32>
      %49 = arith.addf %42, %48 : vector<8x128xf32>
      %c2_i32 = arith.constant 2 : i32
      %50 = vector.broadcast %c2_i32 : i32 to vector<8x128xi32>
      %51 = arith.cmpi eq, %36, %50 : vector<8x128xi32>
      %cst_32 = arith.constant 0.000000e+00 : f32
      %52 = vector.shape_cast %35 : vector<8x1xf32> to vector<8x1xf32>
      %53 = vector.broadcast %52 : vector<8x1xf32> to vector<8x128xf32>
      %54 = vector.broadcast %cst_32 : f32 to vector<8x128xf32>
      %55 = arith.select %51, %53, %54 : vector<8x128xi1>, vector<8x128xf32>
      %56 = arith.addf %49, %55 : vector<8x128xf32>
      %c0_33 = arith.constant 0 : index
      %c0_34 = arith.constant 0 : index
      %57 = vector.load %arg4[%c0_33, %c0_34] : memref<8x128xf32, #tpu.memory_space<vmem>>, vector<8x128xf32>
      tpu.vector_store %arg4[%c0_33, %c0_34], %56 {strides = array<i32>} : memref<8x128xf32, #tpu.memory_space<vmem>>, vector<8x128xf32>,
    } else {
    }
    return
  }
  func.func @transform_0(%arg0: i32, %arg1: i32) -> (i32, i32) {
    %c0_i32 = arith.constant 0 : i32
    return %arg0, %arg1 : i32, i32
  }
  func.func @transform_1(%arg0: i32, %arg1: i32) -> (i32, i32) {
    %c0_i32 = arith.constant 0 : i32
    return %arg0, %arg1 : i32, i32
  }
  func.func @transform_2(%arg0: i32, %arg1: i32) -> (i32, i32) {
    %c0_i32 = arith.constant 0 : i32
    %c0_i32_0 = arith.constant 0 : i32
    return %arg0, %c0_i32 : i32, i32
  }
}

</mosaic_0001>

<llo_original>
// kernel: tpu_custom_call.1
$region0: #{tpu_custom_call.1}
  #allocation0 [shape = 'u32[]', space=smem, size = 0x4, offset = 0x4, fixed_abs, tag = 'smem constant byte address 0x4 - core index']
  #allocation1 [shape = 'u32[144,128]{1,0:T(1,128)}', space=vmem, size = 0x12000, scoped, tag = 'internal scratch']
  #allocation2 [shape = 'f32[8,1024]{1,0:T(8,128)}', space=vmem, size = 0x8000, scoped, tag = 'scratch operand']
  #allocation3 [shape = 'f32[8,1024]{1,0:T(8,128)}', space=vmem, size = 0x8000, scoped, tag = 'scratch operand']
  #allocation4 [shape = 'f32[8,1024]{1,0:T(8,128)}', space=vmem, size = 0x8000, scoped, tag = 'scratch operand']
  %s0 = inlined_call_operand.hbm [shape: f32[8,1024], index: 0, kind: input, shape index: {}]
  %s1 = inlined_call_operand.hbm [shape: f32[8,1024], index: 1, kind: input, shape index: {}]
  %s2 = inlined_call_operand.hbm [shape: f32[8,128], index: 2, kind: output, shape index: {}]
  %s3 = sld [smem:[#allocation0]]
  $region34: #{tpu_custom_call.1} parent=0
    _
  %s5 = ssub.s32 1, %s3
  %s6 = scalar_select 0, %s5, %s3
  $region1: #{tpu_custom_call.1} parent=0
    #allocation5 [shape = 'u8[32768]{0}', space=vmem, size = 0x8000, scoped, tag = 'input window, operand 0, single buffered']
    #allocation6 [shape = 's32[1]{0}', space=sflag, size = 0x4, scoped, tag = 'scoped memory for tpu_custom_call.1']
    #allocation7 [shape = 's32[1]{0}', space=sflag, size = 0x4, scoped, tag = 'scoped memory for tpu_custom_call.1']
    #allocation8 [shape = 'u8[32768]{0}', space=vmem, size = 0x8000, scoped, tag = 'input window, operand 1, single buffered']
    #allocation9 [shape = 's32[1]{0}', space=sflag, size = 0x4, scoped, tag = 'scoped memory for tpu_custom_call.1']
    #allocation10 [shape = 'u8[4096]{0}', space=vmem, size = 0x1000, scoped, tag = 'output window, operand 0, single buffered']
    %7 = vsyncpa [#allocation6], 0
    %8 = vsyncpa [#allocation9], 0
    %9 = vsyncpa [#allocation7], 0
    // Predicated region
    $region2: #{tpu_custom_call.1} parent=1 // pred_check
      _
    $region3: #{tpu_custom_call.1} parent=1 // pred_check_branch
      %11 = sbr.rel (0) target = $region5
    $region4: #{tpu_custom_call.1} parent=1 // pred_region
      %s13 = ssub.s32 1024, 1024
      %14 = vsyncadd [#allocation6], %s13
      %s16 = sshll.u32 [#allocation5], 4
      %s17 = int_to_ptr.vmem [resolvable:$true] %s16
      %19 = dma.hbm_to_vmem [thread:$0]  %s0, 1024, %s17, [#allocation6]
    $region5: #{tpu_custom_call.1} parent=1 // pred_fallthru
      _
    // Predicated region
    $region6: #{tpu_custom_call.1} parent=1 // pred_check
      _
    $region7: #{tpu_custom_call.1} parent=1 // pred_check_branch
      %21 = sbr.rel (0) target = $region9
    $region8: #{tpu_custom_call.1} parent=1 // pred_region
      %s23 = ssub.s32 1024, 1024
      %24 = vsyncadd [#allocation9], %s23
      %s26 = sshll.u32 [#allocation8], 4
      %s27 = int_to_ptr.vmem [resolvable:$true] %s26
      %29 = dma.hbm_to_vmem [thread:$0]  %s1, 1024, %s27, [#allocation9]
    $region9: #{tpu_custom_call.1} parent=1 // pred_fallthru
      _
    // Predicated region
    $region10: #{tpu_custom_call.1} parent=1 // pred_check
      _
    $region11: #{tpu_custom_call.1} parent=1 // pred_check_branch
      %31 = sbr.rel (0) target = $region13
    $region12: #{tpu_custom_call.1} parent=1 // pred_region
      %32 = dma.done [#allocation6], 1024
    $region13: #{tpu_custom_call.1} parent=1 // pred_fallthru
      _
    // Predicated region
    $region14: #{tpu_custom_call.1} parent=1 // pred_check
      _
    $region15: #{tpu_custom_call.1} parent=1 // pred_check_branch
      %34 = sbr.rel (0) target = $region17
    $region16: #{tpu_custom_call.1} parent=1 // pred_region
      %35 = dma.done [#allocation9], 1024
    $region17: #{tpu_custom_call.1} parent=1 // pred_fallthru
      _
    %p36 = scmp.eq.s32.totalorder 0, 0
    // Predicated region
    $region18: #{tpu_custom_call.1} parent=1 // pred_check
      %p37 = pneg %p36
    $region19: #{tpu_custom_call.1} parent=1 // pred_check_branch
      %39 = sbr.rel (%p37) target = $region21
    $region20: #{tpu_custom_call.1} parent=1 // pred_region
      %40 = vst [vmem:[#allocation2] sm:$0xff] 0.0
      %41 = vst [vmem:[#allocation2 + $0x8] sm:$0xff] 0.0
      %42 = vst [vmem:[#allocation2 + $0x10] sm:$0xff] 0.0
      %43 = vst [vmem:[#allocation2 + $0x18] sm:$0xff] 0.0
      %44 = vst [vmem:[#allocation2 + $0x20] sm:$0xff] 0.0
      %45 = vst [vmem:[#allocation2 + $0x28] sm:$0xff] 0.0
      %46 = vst [vmem:[#allocation2 + $0x30] sm:$0xff] 0.0
      %47 = vst [vmem:[#allocation2 + $0x38] sm:$0xff] 0.0
      %48 = vst [vmem:[#allocation3] sm:$0xff] 0.0
      %49 = vst [vmem:[#allocation3 + $0x8] sm:$0xff] 0.0
      %50 = vst [vmem:[#allocation3 + $0x10] sm:$0xff] 0.0
      %51 = vst [vmem:[#allocation3 + $0x18] sm:$0xff] 0.0
      %52 = vst [vmem:[#allocation3 + $0x20] sm:$0xff] 0.0
      %53 = vst [vmem:[#allocation3 + $0x28] sm:$0xff] 0.0
      %54 = vst [vmem:[#allocation3 + $0x30] sm:$0xff] 0.0
      %55 = vst [vmem:[#allocation3 + $0x38] sm:$0xff] 0.0
      %56 = vst [vmem:[#allocation4] sm:$0xff] 0.0
      %57 = vst [vmem:[#allocation4 + $0x8] sm:$0xff] 0.0
      %58 = vst [vmem:[#allocation4 + $0x10] sm:$0xff] 0.0
      %59 = vst [vmem:[#allocation4 + $0x18] sm:$0xff] 0.0
      %60 = vst [vmem:[#allocation4 + $0x20] sm:$0xff] 0.0
      %61 = vst [vmem:[#allocation4 + $0x28] sm:$0xff] 0.0
      %62 = vst [vmem:[#allocation4 + $0x30] sm:$0xff] 0.0
      %63 = vst [vmem:[#allocation4 + $0x38] sm:$0xff] 0.0
    $region21: #{tpu_custom_call.1} parent=1 // pred_fallthru
      _
    %v64 = vld [vmem:[#allocation5] sm:$0xff]
    %v65 = vld [vmem:[#allocation5 + $0x8] sm:$0xff]
    %v66 = vld [vmem:[#allocation5 + $0x10] sm:$0xff]
    %v67 = vld [vmem:[#allocation5 + $0x18] sm:$0xff]
    %v68 = vld [vmem:[#allocation5 + $0x20] sm:$0xff]
    %v69 = vld [vmem:[#allocation5 + $0x28] sm:$0xff]
    %v70 = vld [vmem:[#allocation5 + $0x30] sm:$0xff]
    %v71 = vld [vmem:[#allocation5 + $0x38] sm:$0xff]
    %v72 = vld [vmem:[#allocation8] sm:$0xff]
    %v73 = vld [vmem:[#allocation8 + $0x8] sm:$0xff]
    %v74 = vld [vmem:[#allocation8 + $0x10] sm:$0xff]
    %v75 = vld [vmem:[#allocation8 + $0x18] sm:$0xff]
    %v76 = vld [vmem:[#allocation8 + $0x20] sm:$0xff]
    %v77 = vld [vmem:[#allocation8 + $0x28] sm:$0xff]
    %v78 = vld [vmem:[#allocation8 + $0x30] sm:$0xff]
    %v79 = vld [vmem:[#allocation8 + $0x38] sm:$0xff]
    %vm80 = vcmp.gt.f32.partialorder %v72, 0.5
    %vm81 = vcmp.gt.f32.partialorder %v73, 0.5
    %vm82 = vcmp.gt.f32.partialorder %v74, 0.5
    %vm83 = vcmp.gt.f32.partialorder %v75, 0.5
    %vm84 = vcmp.gt.f32.partialorder %v76, 0.5
    %vm85 = vcmp.gt.f32.partialorder %v77, 0.5
    %vm86 = vcmp.gt.f32.partialorder %v78, 0.5
    %vm87 = vcmp.gt.f32.partialorder %v79, 0.5
    %v88 = vsub.f32 1.0, %v64
    %v89 = vsub.f32 1.0, %v65
    %v90 = vsub.f32 1.0, %v66
    %v91 = vsub.f32 1.0, %v67
    %v92 = vsub.f32 1.0, %v68
    %v93 = vsub.f32 1.0, %v69
    %v94 = vsub.f32 1.0, %v70
    %v95 = vsub.f32 1.0, %v71
    %v96 = vsel %vm80, %v64, %v88
    %v97 = vsel %vm81, %v65, %v89
    %v98 = vsel %vm82, %v66, %v90
    %v99 = vsel %vm83, %v67, %v91
    %v100 = vsel %vm84, %v68, %v92
    %v101 = vsel %vm85, %v69, %v93
    %v102 = vsel %vm86, %v70, %v94
    %v103 = vsel %vm87, %v71, %v95
    %v104 = vlog2.pop %v96
    %v105 = vmul.f32 %v104, 0.6931472
    %v106 = vlog2.pop %v97
    %v107 = vmul.f32 %v106, 0.6931472
    %v108 = vlog2.pop %v98
    %v109 = vmul.f32 %v108, 0.6931472
    %v110 = vlog2.pop %v99
    %v111 = vmul.f32 %v110, 0.6931472
    %v112 = vlog2.pop %v100
    %v113 = vmul.f32 %v112, 0.6931472
    %v114 = vlog2.pop %v101
    %v115 = vmul.f32 %v114, 0.6931472
    %v116 = vlog2.pop %v102
    %v117 = vmul.f32 %v116, 0.6931472
    %v118 = vlog2.pop %v103
    %v119 = vmul.f32 %v118, 0.6931472
    %v120 = vmax.f32 %v105, -100.0
    %v121 = vmax.f32 %v107, -100.0
    %v122 = vmax.f32 %v109, -100.0
    %v123 = vmax.f32 %v111, -100.0
    %v124 = vmax.f32 %v113, -100.0
    %v125 = vmax.f32 %v115, -100.0
    %v126 = vmax.f32 %v117, -100.0
    %v127 = vmax.f32 %v119, -100.0
    %v128 = vld [vmem:[#allocation2] sm:$0xff]
    %v129 = vld [vmem:[#allocation2 + $0x8] sm:$0xff]
    %v130 = vld [vmem:[#allocation2 + $0x10] sm:$0xff]
    %v131 = vld [vmem:[#allocation2 + $0x18] sm:$0xff]
    %v132 = vld [vmem:[#allocation2 + $0x20] sm:$0xff]
    %v133 = vld [vmem:[#allocation2 + $0x28] sm:$0xff]
    %v134 = vld [vmem:[#allocation2 + $0x30] sm:$0xff]
    %v135 = vld [vmem:[#allocation2 + $0x38] sm:$0xff]
    %v136 = vmul.f32 %v64, %v72
    %v137 = vmul.f32 %v65, %v73
    %v138 = vmul.f32 %v66, %v74
    %v139 = vmul.f32 %v67, %v75
    %v140 = vmul.f32 %v68, %v76
    %v141 = vmul.f32 %v69, %v77
    %v142 = vmul.f32 %v70, %v78
    %v143 = vmul.f32 %v71, %v79
    %v144 = vadd.f32 %v128, %v136
    %v145 = vadd.f32 %v129, %v137
    %v146 = vadd.f32 %v130, %v138
    %v147 = vadd.f32 %v131, %v139
    %v148 = vadd.f32 %v132, %v140
    %v149 = vadd.f32 %v133, %v141
    %v150 = vadd.f32 %v134, %v142
    %v151 = vadd.f32 %v135, %v143
    %152 = vst [vmem:[#allocation2] sm:$0xff] %v144
    %153 = vst [vmem:[#allocation2 + $0x8] sm:$0xff] %v145
    %154 = vst [vmem:[#allocation2 + $0x10] sm:$0xff] %v146
    %155 = vst [vmem:[#allocation2 + $0x18] sm:$0xff] %v147
    %156 = vst [vmem:[#allocation2 + $0x20] sm:$0xff] %v148
    %157 = vst [vmem:[#allocation2 + $0x28] sm:$0xff] %v149
    %158 = vst [vmem:[#allocation2 + $0x30] sm:$0xff] %v150
    %159 = vst [vmem:[#allocation2 + $0x38] sm:$0xff] %v151
    %v160 = vld [vmem:[#allocation3] sm:$0xff]
    %v161 = vld [vmem:[#allocation3 + $0x8] sm:$0xff]
    %v162 = vld [vmem:[#allocation3 + $0x10] sm:$0xff]
    %v163 = vld [vmem:[#allocation3 + $0x18] sm:$0xff]
    %v164 = vld [vmem:[#allocation3 + $0x20] sm:$0xff]
    %v165 = vld [vmem:[#allocation3 + $0x28] sm:$0xff]
    %v166 = vld [vmem:[#allocation3 + $0x30] sm:$0xff]
    %v167 = vld [vmem:[#allocation3 + $0x38] sm:$0xff]
    %v168 = vadd.f32 %v64, %v72
    %v169 = vadd.f32 %v65, %v73
    %v170 = vadd.f32 %v66, %v74
    %v171 = vadd.f32 %v67, %v75
    %v172 = vadd.f32 %v68, %v76
    %v173 = vadd.f32 %v69, %v77
    %v174 = vadd.f32 %v70, %v78
    %v175 = vadd.f32 %v71, %v79
    %v176 = vadd.f32 %v160, %v168
    %v177 = vadd.f32 %v161, %v169
    %v178 = vadd.f32 %v162, %v170
    %v179 = vadd.f32 %v163, %v171
    %v180 = vadd.f32 %v164, %v172
    %v181 = vadd.f32 %v165, %v173
    %v182 = vadd.f32 %v166, %v174
    %v183 = vadd.f32 %v167, %v175
    %184 = vst [vmem:[#allocation3] sm:$0xff] %v176
    %185 = vst [vmem:[#allocation3 + $0x8] sm:$0xff] %v177
    %186 = vst [vmem:[#allocation3 + $0x10] sm:$0xff] %v178
    %187 = vst [vmem:[#allocation3 + $0x18] sm:$0xff] %v179
    %188 = vst [vmem:[#allocation3 + $0x20] sm:$0xff] %v180
    %189 = vst [vmem:[#allocation3 + $0x28] sm:$0xff] %v181
    %190 = vst [vmem:[#allocation3 + $0x30] sm:$0xff] %v182
    %191 = vst [vmem:[#allocation3 + $0x38] sm:$0xff] %v183
    %v192 = vld [vmem:[#allocation4] sm:$0xff]
    %v193 = vld [vmem:[#allocation4 + $0x8] sm:$0xff]
    %v194 = vld [vmem:[#allocation4 + $0x10] sm:$0xff]
    %v195 = vld [vmem:[#allocation4 + $0x18] sm:$0xff]
    %v196 = vld [vmem:[#allocation4 + $0x20] sm:$0xff]
    %v197 = vld [vmem:[#allocation4 + $0x28] sm:$0xff]
    %v198 = vld [vmem:[#allocation4 + $0x30] sm:$0xff]
    %v199 = vld [vmem:[#allocation4 + $0x38] sm:$0xff]
    %v200 = vadd.f32 %v192, %v120
    %v201 = vadd.f32 %v193, %v121
    %v202 = vadd.f32 %v194, %v122
    %v203 = vadd.f32 %v195, %v123
    %v204 = vadd.f32 %v196, %v124
    %v205 = vadd.f32 %v197, %v125
    %v206 = vadd.f32 %v198, %v126
    %v207 = vadd.f32 %v199, %v127
    %208 = vst [vmem:[#allocation4] sm:$0xff] %v200
    %209 = vst [vmem:[#allocation4 + $0x8] sm:$0xff] %v201
    %210 = vst [vmem:[#allocation4 + $0x10] sm:$0xff] %v202
    %211 = vst [vmem:[#allocation4 + $0x18] sm:$0xff] %v203
    %212 = vst [vmem:[#allocation4 + $0x20] sm:$0xff] %v204
    %213 = vst [vmem:[#allocation4 + $0x28] sm:$0xff] %v205
    %214 = vst [vmem:[#allocation4 + $0x30] sm:$0xff] %v206
    %215 = vst [vmem:[#allocation4 + $0x38] sm:$0xff] %v207
    // Predicated region
    $region22: #{tpu_custom_call.1} parent=1 // pred_check
      %p216 = pneg %p36
    $region23: #{tpu_custom_call.1} parent=1 // pred_check_branch
      %218 = sbr.rel (%p216) target = $region25
    $region24: #{tpu_custom_call.1} parent=1 // pred_region
      %v219 = vld [vmem:[#allocation2] sm:$0xff]
      %v220 = vld [vmem:[#allocation2 + $0x8] sm:$0xff]
      %v221 = vld [vmem:[#allocation2 + $0x10] sm:$0xff]
      %v222 = vld [vmem:[#allocation2 + $0x18] sm:$0xff]
      %v223 = vld [vmem:[#allocation2 + $0x20] sm:$0xff]
      %v224 = vld [vmem:[#allocation2 + $0x28] sm:$0xff]
      %v225 = vld [vmem:[#allocation2 + $0x30] sm:$0xff]
      %v226 = vld [vmem:[#allocation2 + $0x38] sm:$0xff]
      %v227 = vadd.f32 %v219, %v220
      %v228 = vadd.f32 %v227, %v221
      %v229 = vadd.f32 %v228, %v222
      %v230 = vadd.f32 %v229, %v223
      %v231 = vadd.f32 %v230, %v224
      %v232 = vadd.f32 %v231, %v225
      %v233 = vadd.f32 %v232, %v226
      %234 = vadd.xlane.f32.xlu0 %v233
      %v235 = vpop.xlane.xlu0 %234
      %v236 = vld [vmem:[#allocation3] sm:$0xff]
      %v237 = vld [vmem:[#allocation3 + $0x8] sm:$0xff]
      %v238 = vld [vmem:[#allocation3 + $0x10] sm:$0xff]
      %v239 = vld [vmem:[#allocation3 + $0x18] sm:$0xff]
      %v240 = vld [vmem:[#allocation3 + $0x20] sm:$0xff]
      %v241 = vld [vmem:[#allocation3 + $0x28] sm:$0xff]
      %v242 = vld [vmem:[#allocation3 + $0x30] sm:$0xff]
      %v243 = vld [vmem:[#allocation3 + $0x38] sm:$0xff]
      %v244 = vadd.f32 %v236, %v237
      %v245 = vadd.f32 %v244, %v238
      %v246 = vadd.f32 %v245, %v239
      %v247 = vadd.f32 %v246, %v240
      %v248 = vadd.f32 %v247, %v241
      %v249 = vadd.f32 %v248, %v242
      %v250 = vadd.f32 %v249, %v243
      %251 = vadd.xlane.f32.xlu0 %v250
      %v252 = vpop.xlane.xlu0 %251
      %v253 = vld [vmem:[#allocation4] sm:$0xff]
      %v254 = vld [vmem:[#allocation4 + $0x8] sm:$0xff]
      %v255 = vld [vmem:[#allocation4 + $0x10] sm:$0xff]
      %v256 = vld [vmem:[#allocation4 + $0x18] sm:$0xff]
      %v257 = vld [vmem:[#allocation4 + $0x20] sm:$0xff]
      %v258 = vld [vmem:[#allocation4 + $0x28] sm:$0xff]
      %v259 = vld [vmem:[#allocation4 + $0x30] sm:$0xff]
      %v260 = vld [vmem:[#allocation4 + $0x38] sm:$0xff]
      %v261 = vadd.f32 %v253, %v254
      %v262 = vadd.f32 %v261, %v255
      %v263 = vadd.f32 %v262, %v256
      %v264 = vadd.f32 %v263, %v257
      %v265 = vadd.f32 %v264, %v258
      %v266 = vadd.f32 %v265, %v259
      %v267 = vadd.f32 %v266, %v260
      %268 = vadd.xlane.f32.xlu0 %v267
      %v269 = vpop.xlane.xlu0 %268
      %v270 = vlaneseq
      %v271 = vand.u32 %v270, 127
      %vm272 = vcmp.eq.s32.totalorder %v271, 0
      %v273 = vsel %vm272, %v235, 0.0
      %vm274 = vcmp.eq.s32.totalorder %v271, 1
      %v275 = vsel %vm274, %v252, 0.0
      %v276 = vadd.f32 %v273, %v275
      %vm277 = vcmp.eq.s32.totalorder %v271, 2
      %v278 = vsel %vm277, %v269, 0.0
      %v279 = vadd.f32 %v276, %v278
      %280 = vst [vmem:[#allocation10] sm:$0xff] %v279
    $region25: #{tpu_custom_call.1} parent=1 // pred_fallthru
      _
    // Predicated region
    $region26: #{tpu_custom_call.1} parent=1 // pred_check
      _
    $region27: #{tpu_custom_call.1} parent=1 // pred_check_branch
      %282 = sbr.rel (0) target = $region29
    $region28: #{tpu_custom_call.1} parent=1 // pred_region
      %s284 = ssub.s32 128, 128
      %285 = vsyncadd [#allocation7], %s284
      %s287 = sshll.u32 [#allocation10], 4
      %s288 = int_to_ptr.vmem [resolvable:$true] %s287
      %290 = dma.vmem_to_hbm [thread:$0]  %s288, 128, %s2, [#allocation7]
    $region29: #{tpu_custom_call.1} parent=1 // pred_fallthru
      _
    // Predicated region
    $region30: #{tpu_custom_call.1} parent=1 // pred_check
      _
    $region31: #{tpu_custom_call.1} parent=1 // pred_check_branch
      %292 = sbr.rel (0) target = $region33
    $region32: #{tpu_custom_call.1} parent=1 // pred_region
      %293 = dma.done [#allocation7], 128
    $region33: #{tpu_custom_call.1} parent=1 // pred_fallthru
      _
    %294 = vsyncpa [#allocation6], 1
    %295 = vsyncpa [#allocation9], 1
    %296 = vsyncpa [#allocation7], 1

</llo_original>
